<compile_context>
chip_gen: v7x
topology: tpu7x:2x2x1
jax: 0.10.0
libtpu: 0.0.40
codegen_flags: <defaults>
</compile_context>

<pallas_src>
import functools

import jax
import jax.numpy as jnp
from jax.experimental import pallas as pl
from jax.experimental.pallas import tpu as pltpu


def _round_up(n, m):
    return ((n + m - 1) // m) * m


def _choose_tile_b(batch):
    """Batch tile: full batch if < 8 (full-dim block is legal), otherwise a
    multiple of 8 giving >= 2 grid steps once batch >= 16 (so the 'parallel'
    batch axis can shard across v7x's two TensorCores), capped at 512 rows/step
    for large batches (amortizes the ~0.35 us per-step overhead)."""
    if batch < 8:
        return batch
    if batch <= 1024:
        half = _round_up((batch + 1) // 2, 8)
        return min(half, (batch // 8) * 8)
    return 512


def _make_kernel(num_hidden_linear):
    """Input refs:  x, hidden, W_ih, W_hh, b_cell,
                    [W_hid (L,Hp,Hp), b_hid (L,1,Hp)], W_out, b_out
       Output refs: out, hidden_new
       Weights are pre-transposed (in, out); output feature dims zero-padded to
       multiples of 128 (exact: tanh(0)=0, zero rows/cols contribute nothing)."""

    def compute(x_ref, h_ref, w_ih_ref, w_hh_ref, b_cell_ref,
                w_hid_ref, b_hid_ref, w_out_ref, b_out_ref, out_ref, hid_ref):
        wdt = w_ih_ref.dtype
        # RNNCell (tanh): two MXU dots, f32 accumulation.
        h_new = jnp.tanh(
            jnp.dot(x_ref[...].astype(wdt), w_ih_ref[...],
                    preferred_element_type=jnp.float32)
            + jnp.dot(h_ref[...].astype(wdt), w_hh_ref[...],
                      preferred_element_type=jnp.float32)
            + b_cell_ref[...])
        hid_ref[...] = h_new.astype(hid_ref.dtype)

        # Hidden Linear layers + tanh (static unrolled loop over stacked weights).
        a = h_new
        for l in range(num_hidden_linear):
            a = jnp.tanh(
                jnp.dot(a.astype(w_hid_ref.dtype), w_hid_ref[l],
                        preferred_element_type=jnp.float32)
                + b_hid_ref[l])

        # Value head (output_type=None -> raw linear).
        out = (jnp.dot(a.astype(w_out_ref.dtype), w_out_ref[...],
                       preferred_element_type=jnp.float32)
               + b_out_ref[...])
        out_ref[...] = out.astype(out_ref.dtype)

    if num_hidden_linear > 0:
        def kernel(x_ref, h_ref, w_ih_ref, w_hh_ref, b_cell_ref,
                   w_hid_ref, b_hid_ref, w_out_ref, b_out_ref, out_ref, hid_ref):
            compute(x_ref, h_ref, w_ih_ref, w_hh_ref, b_cell_ref,
                    w_hid_ref, b_hid_ref, w_out_ref, b_out_ref, out_ref, hid_ref)
    else:
        def kernel(x_ref, h_ref, w_ih_ref, w_hh_ref, b_cell_ref,
                   w_out_ref, b_out_ref, out_ref, hid_ref):
            compute(x_ref, h_ref, w_ih_ref, w_hh_ref, b_cell_ref,
                    None, None, w_out_ref, b_out_ref, out_ref, hid_ref)
    return kernel


def prepare_params(params_flat, hidden_features, out_dim,
                   weights_dtype=jnp.float32):
    """One-time transform: pre-sum the cell biases, zero-pad output/feature dims
    to a common 128-multiple, stack hidden-layer weights/biases.

    params_flat = (W_ih^T, W_hh^T, b_ih, b_hh, W_1^T, b_1, ..., W_out^T, b_out)
    with weights stored (in, out) and biases (1, out)."""
    w_ih, w_hh, b_ih, b_hh = params_flat[:4]
    num_hidden_linear = len(hidden_features) - 1
    h_pad = _round_up(max(hidden_features), 128)
    out_pad = _round_up(out_dim, 128)
    h0 = hidden_features[0]

    prepped = {
        # Contraction dims (in_dim, h0) stay unpadded: x / hidden are passed
        # unpadded and full-dim blocks are legal.
        "w_ih": jnp.pad(w_ih, ((0, 0), (0, h_pad - h0))).astype(weights_dtype),
        "w_hh": jnp.pad(w_hh, ((0, 0), (0, h_pad - h0))).astype(weights_dtype),
        "b_cell": jnp.pad(b_ih + b_hh, ((0, 0), (0, h_pad - h0))),  # keep f32
        "w_hid": None,
        "b_hid": None,
    }
    idx = 4
    if num_hidden_linear > 0:
        ws, bs = [], []
        for _ in range(num_hidden_linear):
            w, b = params_flat[idx], params_flat[idx + 1]
            idx += 2
            fin, fout = w.shape
            ws.append(jnp.pad(w, ((0, h_pad - fin), (0, h_pad - fout))))
            bs.append(jnp.pad(b, ((0, 0), (0, h_pad - fout))))
        prepped["w_hid"] = jnp.stack(ws).astype(weights_dtype)  # (L, Hp, Hp)
        prepped["b_hid"] = jnp.stack(bs)                        # (L, 1, Hp)

    w_out, b_out = params_flat[idx], params_flat[idx + 1]
    fin, fout = w_out.shape
    prepped["w_out"] = jnp.pad(
        w_out, ((0, h_pad - fin), (0, out_pad - fout))).astype(weights_dtype)
    prepped["b_out"] = jnp.pad(b_out, ((0, 0), (0, out_pad - fout)))
    return prepped


@functools.partial(jax.jit, static_argnames=("num_hidden_linear", "out_dim"))
def actor_rnn_forward(x, hidden, prepped, num_hidden_linear, out_dim):
    """Single RNNCell step + MLP + value head. Returns (out, hidden_new)."""
    batch, in_dim = x.shape
    hid_dim = hidden.shape[1]
    h_pad = prepped["w_ih"].shape[1]
    out_pad = prepped["w_out"].shape[1]

    tile_b = _choose_tile_b(batch)
    grid = (pl.cdiv(batch, tile_b),)

    def _row(i):   # activations / outputs: tiled over batch
        return (i, 0)

    def _c2(i):    # weights / biases: VMEM-resident, constant across the grid
        return (0, 0)

    def _c3(i):
        return (0, 0, 0)

    inputs = [x, hidden, prepped["w_ih"], prepped["w_hh"], prepped["b_cell"]]
    in_specs = [
        pl.BlockSpec((tile_b, in_dim), _row),    # full (unpadded) last dim
        pl.BlockSpec((tile_b, hid_dim), _row),
        pl.BlockSpec(prepped["w_ih"].shape, _c2),
        pl.BlockSpec(prepped["w_hh"].shape, _c2),
        pl.BlockSpec(prepped["b_cell"].shape, _c2),
    ]
    if num_hidden_linear > 0:
        inputs += [prepped["w_hid"], prepped["b_hid"]]
        in_specs += [pl.BlockSpec(prepped["w_hid"].shape, _c3),
                     pl.BlockSpec(prepped["b_hid"].shape, _c3)]
    inputs += [prepped["w_out"], prepped["b_out"]]
    in_specs += [pl.BlockSpec(prepped["w_out"].shape, _c2),
                 pl.BlockSpec(prepped["b_out"].shape, _c2)]

    # Advisory cost estimate so XLA schedules neighbouring ops around the call.
    flops = 2 * batch * (in_dim * h_pad + hid_dim * h_pad
                         + num_hidden_linear * h_pad * h_pad + h_pad * out_pad)
    transcendentals = batch * h_pad * (1 + num_hidden_linear)
    weight_bytes = sum(int(v.size) * v.dtype.itemsize for v in inputs[2:])
    bytes_accessed = 4 * batch * (in_dim + hid_dim + h_pad + out_pad) + weight_bytes

    # Explicit VMEM budget: double-buffered activation tiles + resident weights.
    act_tile_bytes = 4 * tile_b * (in_dim + hid_dim + h_pad + out_pad)
    vmem_limit = int(min(max(2 * (act_tile_bytes + weight_bytes) + (4 << 20),
                             32 << 20), 64 << 20))

    out_full, hid_full = pl.pallas_call(
        _make_kernel(num_hidden_linear),
        out_shape=(
            jax.ShapeDtypeStruct((batch, out_pad), jnp.float32),
            jax.ShapeDtypeStruct((batch, h_pad), jnp.float32),
        ),
        grid=grid,
        in_specs=in_specs,
        out_specs=(
            pl.BlockSpec((tile_b, out_pad), _row),   # lane-dense stores
            pl.BlockSpec((tile_b, h_pad), _row),
        ),
        compiler_params=pltpu.CompilerParams(
            dimension_semantics=("parallel",),
            vmem_limit_bytes=vmem_limit,
        ),
        cost_estimate=pl.CostEstimate(
            flops=int(flops),
            transcendentals=int(transcendentals),
            bytes_accessed=int(bytes_accessed),
        ),
    )(*inputs)

    # Lane-dense padded outputs -> slice back to logical widths.
    return out_full[:, :out_dim], hid_full[:, :hid_dim]


def init_params(key, in_dim, hidden_features, out_dim):
    """Deterministic synthetic params; weights stored (in, out), biases (1, out)."""
    params = []
    k = key

    def nxt():
        nonlocal k
        k, sub = jax.random.split(k)
        return sub

    h0 = hidden_features[0]
    scale = 1.0 / jnp.sqrt(h0)
    params.append(jax.random.uniform(nxt(), (in_dim, h0), jnp.float32, -scale, scale))  # W_ih^T
    params.append(jax.random.uniform(nxt(), (h0, h0), jnp.float32, -scale, scale))      # W_hh^T
    params.append(jax.random.uniform(nxt(), (1, h0), jnp.float32, -scale, scale))       # b_ih
    params.append(jax.random.uniform(nxt(), (1, h0), jnp.float32, -scale, scale))       # b_hh

    for i in range(len(hidden_features) - 1):
        fin, fout = hidden_features[i], hidden_features[i + 1]
        s = 1.0 / jnp.sqrt(fin)
        params.append(jax.random.uniform(nxt(), (fin, fout), jnp.float32, -s, s))
        params.append(jax.random.uniform(nxt(), (1, fout), jnp.float32, -s, s))

    fin = hidden_features[-1]
    s = 1.0 / jnp.sqrt(fin)
    params.append(jax.random.uniform(nxt(), (fin, out_dim), jnp.float32, -s, s))
    params.append(jax.random.uniform(nxt(), (1, out_dim), jnp.float32, -s, s))
    return tuple(params)


def reference_forward(x, hidden, params, num_hidden_linear):
    """Pure-JAX reference mirroring the PyTorch module (output_type=None)."""
    w_ih, w_hh, b_ih, b_hh = params[:4]
    h_new = jnp.tanh(x @ w_ih + hidden @ w_hh + b_ih + b_hh)
    a = h_new
    idx = 4
    for _ in range(num_hidden_linear):
        w, b = params[idx], params[idx + 1]
        idx += 2
        a = jnp.tanh(a @ w + b)
    w_out, b_out = params[idx], params[idx + 1]
    return a @ w_out + b_out, h_new


if __name__ == "__main__":
    # Small shapes consistent with the module's forward:
    #   x: (batch, input), hidden: (batch, hidden_layers_features[0])
    in_dim = 8
    hidden_features = [32, 32]     # -> one hidden Linear layer (32 -> 32)
    out_dim = 4
    num_hidden_linear = len(hidden_features) - 1

    key = jax.random.PRNGKey(0)
    kp, kd = jax.random.split(key)
    params = init_params(kp, in_dim, hidden_features, out_dim)
    # One-time parameter transform (fuse cell bias, pad to 128-lane outputs, stack MLP).
    prepped = prepare_params(params, hidden_features, out_dim)

    # batch=2: single-block path. batch=33: multi-grid-step ("parallel") path.
    for batch in (2, 33):
        kx, kh = jax.random.split(jax.random.fold_in(kd, batch))
        x = jax.random.normal(kx, (batch, in_dim), jnp.float32)
        hidden = jax.random.normal(kh, (batch, hidden_features[0]), jnp.float32)

        out, hidden_new = actor_rnn_forward(
            x, hidden, prepped, num_hidden_linear, out_dim)
        out, hidden_new = jax.block_until_ready((out, hidden_new))

        ref_out, ref_hidden = reference_forward(x, hidden, params, num_hidden_linear)
        assert out.shape == ref_out.shape and hidden_new.shape == ref_hidden.shape
        assert jnp.allclose(out, ref_out, atol=1e-5, rtol=1e-5), batch
        assert jnp.allclose(hidden_new, ref_hidden, atol=1e-5, rtol=1e-5), batch

    print("KERNEL_OK")
</pallas_src>

<mosaic_0001>
module attributes {stable_mosaic.version = 11 : i64} {
  func.func @kernel(%arg0: i32, %arg1: memref<2x8xf32, #tpu.memory_space<vmem>>, %arg2: memref<2x32xf32, #tpu.memory_space<vmem>>, %arg3: memref<8x128xf32, #tpu.memory_space<vmem>>, %arg4: memref<32x128xf32, #tpu.memory_space<vmem>>, %arg5: memref<1x128xf32, #tpu.memory_space<vmem>>, %arg6: memref<1x128x128xf32, #tpu.memory_space<vmem>>, %arg7: memref<1x1x128xf32, #tpu.memory_space<vmem>>, %arg8: memref<128x128xf32, #tpu.memory_space<vmem>>, %arg9: memref<1x128xf32, #tpu.memory_space<vmem>>, %arg10: memref<2x128xf32, #tpu.memory_space<vmem>>, %arg11: memref<2x128xf32, #tpu.memory_space<vmem>>) attributes {dimension_semantics = [#tpu.dimension_semantics<parallel>], iteration_bounds = array<i64: 1>, scalar_prefetch = 0 : i64, scratch_operands = 0 : i64, tpu.core_type = #tpu.core_type<tc>, window_params = [{transform_indices = @transform_0, window_bounds = array<i64: 2, 8>}, {transform_indices = @transform_1, window_bounds = array<i64: 2, 32>}, {pipeline_mode = #tpu.pipeline_mode<synchronous>, transform_indices = @transform_2, window_bounds = array<i64: 8, 128>}, {pipeline_mode = #tpu.pipeline_mode<synchronous>, transform_indices = @transform_3, window_bounds = array<i64: 32, 128>}, {pipeline_mode = #tpu.pipeline_mode<synchronous>, transform_indices = @transform_4, window_bounds = array<i64: 1, 128>}, {pipeline_mode = #tpu.pipeline_mode<synchronous>, transform_indices = @transform_5, window_bounds = array<i64: 1, 128, 128>}, {pipeline_mode = #tpu.pipeline_mode<synchronous>, transform_indices = @transform_6, window_bounds = array<i64: 1, 1, 128>}, {pipeline_mode = #tpu.pipeline_mode<synchronous>, transform_indices = @transform_7, window_bounds = array<i64: 128, 128>}, {pipeline_mode = #tpu.pipeline_mode<synchronous>, transform_indices = @transform_8, window_bounds = array<i64: 1, 128>}, {transform_indices = @transform_9, window_bounds = array<i64: 2, 128>}, {transform_indices = @transform_10, window_bounds = array<i64: 2, 128>}]} {
    %c0 = arith.constant 0 : index
    %c0_0 = arith.constant 0 : index
    %0 = vector.load %arg1[%c0, %c0_0] : memref<2x8xf32, #tpu.memory_space<vmem>>, vector<2x8xf32>
    %c0_1 = arith.constant 0 : index
    %c0_2 = arith.constant 0 : index
    %1 = vector.load %arg3[%c0_1, %c0_2] : memref<8x128xf32, #tpu.memory_space<vmem>>, vector<8x128xf32>
    %cst = arith.constant dense<0.000000e+00> : vector<2x128xf32>
    %2 = tpu.matmul %0, %1, %cst {dimension_numbers = #tpu.dot_dimension_numbers<[1], [0], [0], [1], [0, 0, 1, 1], [], []>} : vector<2x8xf32>, vector<8x128xf32>, vector<2x128xf32> -> vector<2x128xf32>
    %c0_3 = arith.constant 0 : index
    %c0_4 = arith.constant 0 : index
    %3 = vector.load %arg2[%c0_3, %c0_4] : memref<2x32xf32, #tpu.memory_space<vmem>>, vector<2x32xf32>
    %c0_5 = arith.constant 0 : index
    %c0_6 = arith.constant 0 : index
    %4 = vector.load %arg4[%c0_5, %c0_6] : memref<32x128xf32, #tpu.memory_space<vmem>>, vector<32x128xf32>
    %cst_7 = arith.constant dense<0.000000e+00> : vector<2x128xf32>
    %5 = tpu.matmul %3, %4, %cst_7 {dimension_numbers = #tpu.dot_dimension_numbers<[1], [0], [0], [1], [0, 0, 1, 1], [], []>} : vector<2x32xf32>, vector<32x128xf32>, vector<2x128xf32> -> vector<2x128xf32>
    %6 = arith.addf %2, %5 : vector<2x128xf32>
    %c0_8 = arith.constant 0 : index
    %c0_9 = arith.constant 0 : index
    %7 = vector.load %arg5[%c0_8, %c0_9] : memref<1x128xf32, #tpu.memory_space<vmem>>, vector<1x128xf32>
    %8 = vector.broadcast %7 : vector<1x128xf32> to vector<2x128xf32>
    %9 = arith.addf %6, %8 : vector<2x128xf32>
    %10 = math.tanh %9 : vector<2x128xf32>
    %c0_10 = arith.constant 0 : index
    %c0_11 = arith.constant 0 : index
    %11 = vector.load %arg11[%c0_10, %c0_11] : memref<2x128xf32, #tpu.memory_space<vmem>>, vector<2x128xf32>
    tpu.vector_store %arg11[%c0_10, %c0_11], %10 {strides = array<i32>} : memref<2x128xf32, #tpu.memory_space<vmem>>, vector<2x128xf32>,
    %c0_12 = arith.constant 0 : index
    %c0_13 = arith.constant 0 : index
    %c0_14 = arith.constant 0 : index
    %12 = vector.load %arg6[%c0_12, %c0_13, %c0_14] : memref<1x128x128xf32, #tpu.memory_space<vmem>>, vector<1x128x128xf32>
    %13 = vector.shape_cast %12 : vector<1x128x128xf32> to vector<128x128xf32>
    %cst_15 = arith.constant dense<0.000000e+00> : vector<2x128xf32>
    %14 = tpu.matmul %10, %13, %cst_15 {dimension_numbers = #tpu.dot_dimension_numbers<[1], [0], [0], [1], [0, 0, 1, 1], [], []>} : vector<2x128xf32>, vector<128x128xf32>, vector<2x128xf32> -> vector<2x128xf32>
    %c0_16 = arith.constant 0 : index
    %c0_17 = arith.constant 0 : index
    %c0_18 = arith.constant 0 : index
    %15 = vector.load %arg7[%c0_16, %c0_17, %c0_18] : memref<1x1x128xf32, #tpu.memory_space<vmem>>, vector<1x1x128xf32>
    %16 = vector.shape_cast %15 : vector<1x1x128xf32> to vector<1x128xf32>
    %17 = vector.broadcast %16 : vector<1x128xf32> to vector<2x128xf32>
    %18 = arith.addf %14, %17 : vector<2x128xf32>
    %19 = math.tanh %18 : vector<2x128xf32>
    %c0_19 = arith.constant 0 : index
    %c0_20 = arith.constant 0 : index
    %20 = vector.load %arg8[%c0_19, %c0_20] : memref<128x128xf32, #tpu.memory_space<vmem>>, vector<128x128xf32>
    %cst_21 = arith.constant dense<0.000000e+00> : vector<2x128xf32>
    %21 = tpu.matmul %19, %20, %cst_21 {dimension_numbers = #tpu.dot_dimension_numbers<[1], [0], [0], [1], [0, 0, 1, 1], [], []>} : vector<2x128xf32>, vector<128x128xf32>, vector<2x128xf32> -> vector<2x128xf32>
    %c0_22 = arith.constant 0 : index
    %c0_23 = arith.constant 0 : index
    %22 = vector.load %arg9[%c0_22, %c0_23] : memref<1x128xf32, #tpu.memory_space<vmem>>, vector<1x128xf32>
    %23 = vector.broadcast %22 : vector<1x128xf32> to vector<2x128xf32>
    %24 = arith.addf %21, %23 : vector<2x128xf32>
    %c0_24 = arith.constant 0 : index
    %c0_25 = arith.constant 0 : index
    %25 = vector.load %arg10[%c0_24, %c0_25] : memref<2x128xf32, #tpu.memory_space<vmem>>, vector<2x128xf32>
    tpu.vector_store %arg10[%c0_24, %c0_25], %24 {strides = array<i32>} : memref<2x128xf32, #tpu.memory_space<vmem>>, vector<2x128xf32>,
    return
  }
  func.func @transform_0(%arg0: i32) -> (i32, i32) {
    %c0_i32 = arith.constant 0 : i32
    %c0_i32_0 = arith.constant 0 : i32
    return %arg0, %c0_i32 : i32, i32
  }
  func.func @transform_1(%arg0: i32) -> (i32, i32) {
    %c0_i32 = arith.constant 0 : i32
    %c0_i32_0 = arith.constant 0 : i32
    return %arg0, %c0_i32 : i32, i32
  }
  func.func @transform_2(%arg0: i32) -> (i32, i32) {
    %c0_i32 = arith.constant 0 : i32
    %c0_i32_0 = arith.constant 0 : i32
    %c0_i32_1 = arith.constant 0 : i32
    return %c0_i32, %c0_i32_0 : i32, i32
  }
  func.func @transform_3(%arg0: i32) -> (i32, i32) {
    %c0_i32 = arith.constant 0 : i32
    %c0_i32_0 = arith.constant 0 : i32
    %c0_i32_1 = arith.constant 0 : i32
    return %c0_i32, %c0_i32_0 : i32, i32
  }
  func.func @transform_4(%arg0: i32) -> (i32, i32) {
    %c0_i32 = arith.constant 0 : i32
    %c0_i32_0 = arith.constant 0 : i32
    %c0_i32_1 = arith.constant 0 : i32
    return %c0_i32, %c0_i32_0 : i32, i32
  }
  func.func @transform_5(%arg0: i32) -> (i32, i32, i32) {
    %c0_i32 = arith.constant 0 : i32
    %c0_i32_0 = arith.constant 0 : i32
    %c0_i32_1 = arith.constant 0 : i32
    %c0_i32_2 = arith.constant 0 : i32
    return %c0_i32, %c0_i32_0, %c0_i32_1 : i32, i32, i32
  }
  func.func @transform_6(%arg0: i32) -> (i32, i32, i32) {
    %c0_i32 = arith.constant 0 : i32
    %c0_i32_0 = arith.constant 0 : i32
    %c0_i32_1 = arith.constant 0 : i32
    %c0_i32_2 = arith.constant 0 : i32
    return %c0_i32, %c0_i32_0, %c0_i32_1 : i32, i32, i32
  }
  func.func @transform_7(%arg0: i32) -> (i32, i32) {
    %c0_i32 = arith.constant 0 : i32
    %c0_i32_0 = arith.constant 0 : i32
    %c0_i32_1 = arith.constant 0 : i32
    return %c0_i32, %c0_i32_0 : i32, i32
  }
  func.func @transform_8(%arg0: i32) -> (i32, i32) {
    %c0_i32 = arith.constant 0 : i32
    %c0_i32_0 = arith.constant 0 : i32
    %c0_i32_1 = arith.constant 0 : i32
    return %c0_i32, %c0_i32_0 : i32, i32
  }
  func.func @transform_9(%arg0: i32) -> (i32, i32) {
    %c0_i32 = arith.constant 0 : i32
    %c0_i32_0 = arith.constant 0 : i32
    return %arg0, %c0_i32 : i32, i32
  }
  func.func @transform_10(%arg0: i32) -> (i32, i32) {
    %c0_i32 = arith.constant 0 : i32
    %c0_i32_0 = arith.constant 0 : i32
    return %arg0, %c0_i32 : i32, i32
  }
}

</mosaic_0001>

<llo_original>
// kernel: actor_rnn_forward.1
$region0: #{actor_rnn_forward.1}
  #allocation0 [shape = 'u32[]', space=smem, size = 0x4, offset = 0x4, fixed_abs, tag = 'smem constant byte address 0x4 - core index']
  #allocation1 [shape = 'u32[144,128]{1,0:T(1,128)}', space=vmem, size = 0x12000, scoped, tag = 'internal scratch']
  %s0 = inlined_call_operand.hbm [shape: f32[2,8], index: 0, kind: input, shape index: {}]
  %s1 = inlined_call_operand.vmem [shape: f32[2,32], index: 1, kind: input, shape index: {}]
  %s2 = inlined_call_operand.vmem [shape: f32[8,128], index: 2, kind: input, shape index: {}]
  %s3 = inlined_call_operand.hbm [shape: f32[32,128], index: 3, kind: input, shape index: {}]
  %s4 = inlined_call_operand.vmem [shape: f32[1,128], index: 4, kind: input, shape index: {}]
  %s5 = inlined_call_operand.hbm [shape: f32[1,128,128], index: 5, kind: input, shape index: {}]
  %s6 = inlined_call_operand.vmem [shape: f32[1,1,128], index: 6, kind: input, shape index: {}]
  %s7 = inlined_call_operand.hbm [shape: f32[128,128], index: 7, kind: input, shape index: {}]
  %s8 = inlined_call_operand.vmem [shape: f32[1,128], index: 8, kind: input, shape index: {}]
  %s9 = inlined_call_operand.hbm [shape: f32[2,128], index: 9, kind: output, shape index: {0}]
  %s10 = inlined_call_operand.hbm [shape: f32[2,128], index: 10, kind: output, shape index: {1}]
  %11 = xla_tuple %s9, %s10
  %s12 = sld [smem:[#allocation0]]
  $region70: #{actor_rnn_forward.1} parent=0
    _
  %s14 = ssub.s32 1, %s12
  %s15 = scalar_select 0, %s14, %s12
  $region1: #{actor_rnn_forward.1} parent=0
    #allocation2 [shape = 'u8[1024]{0}', space=vmem, size = 0x400, scoped, tag = 'input window, operand 0, single buffered']
    #allocation3 [shape = 's32[1]{0}', space=sflag, size = 0x4, scoped, tag = 'scoped memory for actor_rnn_forward.1']
    #allocation4 [shape = 's32[1]{0}', space=sflag, size = 0x4, scoped, tag = 'scoped memory for actor_rnn_forward.1']
    #allocation5 [shape = 'u8[16384]{0}', space=vmem, size = 0x4000, scoped, tag = 'input window, operand 3, single buffered']
    #allocation6 [shape = 's32[1]{0}', space=sflag, size = 0x4, scoped, tag = 'scoped memory for actor_rnn_forward.1']
    #allocation7 [shape = 'u8[65536]{0}', space=vmem, size = 0x10000, scoped, tag = 'input window, operand 5, single buffered']
    #allocation8 [shape = 'u8[65536]{0}', space=vmem, size = 0x10000, scoped, tag = 'input window, operand 7, single buffered']
    #allocation9 [shape = 's32[1]{0}', space=sflag, size = 0x4, scoped, tag = 'scoped memory for actor_rnn_forward.1']
    #allocation10 [shape = 'u8[1024]{0}', space=vmem, size = 0x400, scoped, tag = 'output window, operand 0, single buffered']
    #allocation11 [shape = 'u8[1024]{0}', space=vmem, size = 0x400, scoped, tag = 'output window, operand 1, single buffered']
    #allocation12 [shape = 's32[1]{0}', space=sflag, size = 0x4, scoped, tag = 'scoped memory for actor_rnn_forward.1']
    %16 = vsyncpa [#allocation3], 0
    %17 = vsyncpa [#allocation6], 0
    %18 = vsyncpa [#allocation9], 0
    %19 = vsyncpa [#allocation4], 0
    %20 = vsyncpa [#allocation12], 0
    // Predicated region
    $region2: #{actor_rnn_forward.1} parent=1 // pred_check
      _
    $region3: #{actor_rnn_forward.1} parent=1 // pred_check_branch
      %22 = sbr.rel (0) target = $region5
    $region4: #{actor_rnn_forward.1} parent=1 // pred_region
      %s24 = ssub.s32 32, 32
      %25 = vsyncadd [#allocation3], %s24
      %s27 = sshll.u32 [#allocation2], 4
      %s28 = int_to_ptr.vmem [resolvable:$true] %s27
      %30 = dma.hbm_to_vmem [thread:$0]  %s0, 32, %s28, [#allocation3]
    $region5: #{actor_rnn_forward.1} parent=1 // pred_fallthru
      _
    // Predicated region
    $region6: #{actor_rnn_forward.1} parent=1 // pred_check
      _
    $region7: #{actor_rnn_forward.1} parent=1 // pred_check_branch
      %32 = sbr.rel (0) target = $region9
    $region8: #{actor_rnn_forward.1} parent=1 // pred_region
      _
    $region9: #{actor_rnn_forward.1} parent=1 // pred_fallthru
      _
    // Predicated region
    $region10: #{actor_rnn_forward.1} parent=1 // pred_check
      _
    $region11: #{actor_rnn_forward.1} parent=1 // pred_check_branch
      %34 = sbr.rel (0) target = $region13
    $region12: #{actor_rnn_forward.1} parent=1 // pred_region
      _
    $region13: #{actor_rnn_forward.1} parent=1 // pred_fallthru
      _
    // Predicated region
    $region14: #{actor_rnn_forward.1} parent=1 // pred_check
      _
    $region15: #{actor_rnn_forward.1} parent=1 // pred_check_branch
      %36 = sbr.rel (0) target = $region17
    $region16: #{actor_rnn_forward.1} parent=1 // pred_region
      %s38 = ssub.s32 512, 512
      %39 = vsyncadd [#allocation6], %s38
      %s40 = sshll.u32 [#allocation5], 4
      %s41 = int_to_ptr.vmem [resolvable:$true] %s40
      %46 = dma.hbm_to_vmem [thread:$0]  %s3, 512, %s41, [#allocation6], 128, 128, 8
    $region17: #{actor_rnn_forward.1} parent=1 // pred_fallthru
      _
    // Predicated region
    $region18: #{actor_rnn_forward.1} parent=1 // pred_check
      _
    $region19: #{actor_rnn_forward.1} parent=1 // pred_check_branch
      %48 = sbr.rel (0) target = $region21
    $region20: #{actor_rnn_forward.1} parent=1 // pred_region
      _
    $region21: #{actor_rnn_forward.1} parent=1 // pred_fallthru
      _
    // Predicated region
    $region22: #{actor_rnn_forward.1} parent=1 // pred_check
      _
    $region23: #{actor_rnn_forward.1} parent=1 // pred_check_branch
      %50 = sbr.rel (0) target = $region25
    $region24: #{actor_rnn_forward.1} parent=1 // pred_region
      %s52 = ssub.s32 2048, 2048
      %53 = vsyncadd [#allocation6], %s52
      %s54 = sshll.u32 [#allocation7], 4
      %s55 = int_to_ptr.vmem [resolvable:$true] %s54
      %60 = dma.hbm_to_vmem [thread:$0]  %s5, 2048, %s55, [#allocation6], 128, 128, 8
    $region25: #{actor_rnn_forward.1} parent=1 // pred_fallthru
      _
    // Predicated region
    $region26: #{actor_rnn_forward.1} parent=1 // pred_check
      _
    $region27: #{actor_rnn_forward.1} parent=1 // pred_check_branch
      %62 = sbr.rel (0) target = $region29
    $region28: #{actor_rnn_forward.1} parent=1 // pred_region
      _
    $region29: #{actor_rnn_forward.1} parent=1 // pred_fallthru
      _
    // Predicated region
    $region30: #{actor_rnn_forward.1} parent=1 // pred_check
      _
    $region31: #{actor_rnn_forward.1} parent=1 // pred_check_branch
      %64 = sbr.rel (0) target = $region33
    $region32: #{actor_rnn_forward.1} parent=1 // pred_region
      %s66 = ssub.s32 2048, 2048
      %67 = vsyncadd [#allocation9], %s66
      %s68 = sshll.u32 [#allocation8], 4
      %s69 = int_to_ptr.vmem [resolvable:$true] %s68
      %74 = dma.hbm_to_vmem [thread:$0]  %s7, 2048, %s69, [#allocation9], 128, 128, 8
    $region33: #{actor_rnn_forward.1} parent=1 // pred_fallthru
      _
    // Predicated region
    $region34: #{actor_rnn_forward.1} parent=1 // pred_check
      _
    $region35: #{actor_rnn_forward.1} parent=1 // pred_check_branch
      %76 = sbr.rel (0) target = $region37
    $region36: #{actor_rnn_forward.1} parent=1 // pred_region
      _
    $region37: #{actor_rnn_forward.1} parent=1 // pred_fallthru
      _
    // Predicated region
    $region38: #{actor_rnn_forward.1} parent=1 // pred_check
      _
    $region39: #{actor_rnn_forward.1} parent=1 // pred_check_branch
      %78 = sbr.rel (0) target = $region41
    $region40: #{actor_rnn_forward.1} parent=1 // pred_region
      %79 = dma.done [#allocation3], 32
    $region41: #{actor_rnn_forward.1} parent=1 // pred_fallthru
      _
    // Predicated region
    $region42: #{actor_rnn_forward.1} parent=1 // pred_check
      _
    $region43: #{actor_rnn_forward.1} parent=1 // pred_check_branch
      %81 = sbr.rel (0) target = $region45
    $region44: #{actor_rnn_forward.1} parent=1 // pred_region
      %82 = dma.done [#allocation6], 512
    $region45: #{actor_rnn_forward.1} parent=1 // pred_fallthru
      _
    // Predicated region
    $region46: #{actor_rnn_forward.1} parent=1 // pred_check
      _
    $region47: #{actor_rnn_forward.1} parent=1 // pred_check_branch
      %84 = sbr.rel (0) target = $region49
    $region48: #{actor_rnn_forward.1} parent=1 // pred_region
      %85 = dma.done [#allocation6], 2048
    $region49: #{actor_rnn_forward.1} parent=1 // pred_fallthru
      _
    // Predicated region
    $region50: #{actor_rnn_forward.1} parent=1 // pred_check
      _
    $region51: #{actor_rnn_forward.1} parent=1 // pred_check_branch
      %87 = sbr.rel (0) target = $region53
    $region52: #{actor_rnn_forward.1} parent=1 // pred_region
      %88 = dma.done [#allocation9], 2048
    $region53: #{actor_rnn_forward.1} parent=1 // pred_fallthru
      _
    %v89 = vld [vmem:[#allocation2] sm:$0x3]
    %v90 = vld [vmem:[%s2] sm:$0xff]
    %v91 = vld [vmem:[%s1] sm:$0x3]
    %v92 = vld [vmem:[#allocation5] sm:$0xff]
    %v93 = vld [vmem:[#allocation5 + $0x8] sm:$0xff]
    %v94 = vld [vmem:[#allocation5 + $0x10] sm:$0xff]
    %v95 = vld [vmem:[#allocation5 + $0x18] sm:$0xff]
    %vm96 = vcmask 261120
    %v98 = vsel %vm96, %v91, 0
    %100 = vmatprep.subr.mxu0 0.0
    %101 = vmatpush1.msra.mxu0 %v92
    %102 = vmatprep.subr.mxu0 0.0
    %103 = vmatpush1.msra.mxu0 %v93
    %104 = vmatprep.subr.mxu0 0.0
    %105 = vmatpush1.msra.mxu0 %v94
    %106 = vmatprep.subr.mxu0 0.0
    %107 = vmatpush1.msra.mxu0 %v95
    %108 = vmatprep.subr.mxu0 0.0
    %109 = vmatpush1.msra.mxu0 0.0
    %110 = vmatprep.subr.mxu0 0.0
    %111 = vmatpush1.msra.mxu0 0.0
    %112 = vmatprep.subr.mxu0 0.0
    %113 = vmatpush1.msra.mxu0 0.0
    %114 = vmatprep.subr.mxu0 0.0
    %115 = vmatpush1.msra.mxu0 0.0
    %116 = vmatprep.subr.mxu0 0.0
    %117 = vmatpush1.msra.mxu0 0.0
    %118 = vmatprep.subr.mxu0 0.0
    %119 = vmatpush1.msra.mxu0 0.0
    %120 = vmatprep.subr.mxu0 0.0
    %121 = vmatpush1.msra.mxu0 0.0
    %122 = vmatprep.subr.mxu0 0.0
    %123 = vmatpush1.msra.mxu0 0.0
    %124 = vmatprep.subr.mxu0 0.0
    %125 = vmatpush1.msra.mxu0 0.0
    %126 = vmatprep.subr.mxu0 0.0
    %127 = vmatpush1.msra.mxu0 0.0
    %128 = vmatprep.subr.mxu0 0.0
    %129 = vmatpush1.msra.mxu0 0.0
    %130 = vmatprep.subr.mxu0 0.0
    %131 = vmatpush1.msra.mxu0 0.0
    %132 = vmatprep.subr.mxu0 0.0
    %133 = vmatpush1.msra.mxu0 0.0
    %134 = vmatprep.subr.mxu0 0.0
    %135 = vmatpush1.msra.mxu0 0.0
    %136 = vmatprep.subr.mxu0 0.0
    %137 = vmatpush1.msra.mxu0 0.0
    %138 = vmatprep.subr.mxu0 0.0
    %139 = vmatpush1.msra.mxu0 0.0
    %140 = vmatprep.subr.mxu0 0.0
    %141 = vmatpush1.msra.mxu0 0.0
    %142 = vmatprep.subr.mxu0 0.0
    %143 = vmatpush1.msra.mxu0 0.0
    %144 = vmatprep.subr.mxu0 0.0
    %145 = vmatpush1.msra.mxu0 0.0
    %146 = vmatprep.subr.mxu0 0.0
    %147 = vmatpush1.msra.mxu0 0.0
    %148 = vmatprep.subr.mxu0 0.0
    %149 = vmatpush1.msra.mxu0 0.0
    %150 = vmatprep.subr.mxu0 0.0
    %151 = vmatpush1.msra.mxu0 0.0
    %152 = vmatprep.subr.mxu0 0.0
    %153 = vmatpush1.msra.mxu0 0.0
    %154 = vmatprep.subr.mxu0 0.0
    %155 = vmatpush1.msra.mxu0 0.0
    %156 = vmatprep.subr.mxu0 0.0
    %157 = vmatpush1.msra.mxu0 0.0
    %158 = vmatprep.subr.mxu0 0.0
    %159 = vmatpush1.msra.mxu0 0.0
    %160 = vmatprep.subr.mxu0 0.0
    %161 = vmatpush1.msra.mxu0 0.0
    %162 = vmatprep.subr.mxu0 0.0
    %163 = vmatpush1.msra.mxu0 0.0
    %164 = vmatprep.mubr.f32.mxu0 0.0
    %165 = vmatmul.mubr.f32.gmra.mrb[0].mxu0 %v98
    %v166 = vpop.f32.mrb[0].mxu0
    %v167 = vadd.f32 0.0, %v166
    %v168 = vpop.f32.mrb[0].mxu0
    %169 = vdwg.mxu0
    %vm170 = vcmask 64512
    %v172 = vsel %vm170, %v89, 0
    %174 = vmatprep.subr.mxu0 0.0
    %175 = vmatpush1.msra.mxu0 %v90
    %176 = vmatprep.subr.mxu0 0.0
    %177 = vmatpush1.msra.mxu0 0.0
    %178 = vmatprep.subr.mxu0 0.0
    %179 = vmatpush1.msra.mxu0 0.0
    %180 = vmatprep.subr.mxu0 0.0
    %181 = vmatpush1.msra.mxu0 0.0
    %182 = vmatprep.subr.mxu0 0.0
    %183 = vmatpush1.msra.mxu0 0.0
    %184 = vmatprep.subr.mxu0 0.0
    %185 = vmatpush1.msra.mxu0 0.0
    %186 = vmatprep.subr.mxu0 0.0
    %187 = vmatpush1.msra.mxu0 0.0
    %188 = vmatprep.subr.mxu0 0.0
    %189 = vmatpush1.msra.mxu0 0.0
    %190 = vmatprep.subr.mxu0 0.0
    %191 = vmatpush1.msra.mxu0 0.0
    %192 = vmatprep.subr.mxu0 0.0
    %193 = vmatpush1.msra.mxu0 0.0
    %194 = vmatprep.subr.mxu0 0.0
    %195 = vmatpush1.msra.mxu0 0.0
    %196 = vmatprep.subr.mxu0 0.0
    %197 = vmatpush1.msra.mxu0 0.0
    %198 = vmatprep.subr.mxu0 0.0
    %199 = vmatpush1.msra.mxu0 0.0
    %200 = vmatprep.subr.mxu0 0.0
    %201 = vmatpush1.msra.mxu0 0.0
    %202 = vmatprep.subr.mxu0 0.0
    %203 = vmatpush1.msra.mxu0 0.0
    %204 = vmatprep.subr.mxu0 0.0
    %205 = vmatpush1.msra.mxu0 0.0
    %206 = vmatprep.subr.mxu0 0.0
    %207 = vmatpush1.msra.mxu0 0.0
    %208 = vmatprep.subr.mxu0 0.0
    %209 = vmatpush1.msra.mxu0 0.0
    %210 = vmatprep.subr.mxu0 0.0
    %211 = vmatpush1.msra.mxu0 0.0
    %212 = vmatprep.subr.mxu0 0.0
    %213 = vmatpush1.msra.mxu0 0.0
    %214 = vmatprep.subr.mxu0 0.0
    %215 = vmatpush1.msra.mxu0 0.0
    %216 = vmatprep.subr.mxu0 0.0
    %217 = vmatpush1.msra.mxu0 0.0
    %218 = vmatprep.subr.mxu0 0.0
    %219 = vmatpush1.msra.mxu0 0.0
    %220 = vmatprep.subr.mxu0 0.0
    %221 = vmatpush1.msra.mxu0 0.0
    %222 = vmatprep.subr.mxu0 0.0
    %223 = vmatpush1.msra.mxu0 0.0
    %224 = vmatprep.subr.mxu0 0.0
    %225 = vmatpush1.msra.mxu0 0.0
    %226 = vmatprep.subr.mxu0 0.0
    %227 = vmatpush1.msra.mxu0 0.0
    %228 = vmatprep.subr.mxu0 0.0
    %229 = vmatpush1.msra.mxu0 0.0
    %230 = vmatprep.subr.mxu0 0.0
    %231 = vmatpush1.msra.mxu0 0.0
    %232 = vmatprep.subr.mxu0 0.0
    %233 = vmatpush1.msra.mxu0 0.0
    %234 = vmatprep.subr.mxu0 0.0
    %235 = vmatpush1.msra.mxu0 0.0
    %236 = vmatprep.subr.mxu0 0.0
    %237 = vmatpush1.msra.mxu0 0.0
    %238 = vmatprep.mubr.f32.mxu0 0.0
    %239 = vmatmul.mubr.f32.gmra.mrb[0].mxu0 %v172
    %v240 = vpop.f32.mrb[0].mxu0
    %v241 = vadd.f32 %v167, %v240
    %v242 = vpop.f32.mrb[0].mxu0
    %243 = vdwg.mxu0
    %v244 = vld [vmem:[%s4] sm:$0x1]
    %v246 = vlaneseq
    %v247 = vshrl.u32 %v246, 7
    %v248 = vsub.s32 0, %v247
    %v249 = vrot.slane %v244, %v248
    %v251 = vadd.f32 %v241, %v249
    %v252 = vtanh.pop %v251
    %253 = vst [vmem:[#allocation11] sm:$0x3] %v252
    %v254 = vld [vmem:[#allocation7] sm:$0xff]
    %v255 = vld [vmem:[#allocation7 + $0x8] sm:$0xff]
    %v256 = vld [vmem:[#allocation7 + $0x10] sm:$0xff]
    %v257 = vld [vmem:[#allocation7 + $0x18] sm:$0xff]
    %v258 = vld [vmem:[#allocation7 + $0x20] sm:$0xff]
    %v259 = vld [vmem:[#allocation7 + $0x28] sm:$0xff]
    %v260 = vld [vmem:[#allocation7 + $0x30] sm:$0xff]
    %v261 = vld [vmem:[#allocation7 + $0x38] sm:$0xff]
    %v262 = vld [vmem:[#allocation7 + $0x40] sm:$0xff]
    %v263 = vld [vmem:[#allocation7 + $0x48] sm:$0xff]
    %v264 = vld [vmem:[#allocation7 + $0x50] sm:$0xff]
    %v265 = vld [vmem:[#allocation7 + $0x58] sm:$0xff]
    %v266 = vld [vmem:[#allocation7 + $0x60] sm:$0xff]
    %v267 = vld [vmem:[#allocation7 + $0x68] sm:$0xff]
    %v268 = vld [vmem:[#allocation7 + $0x70] sm:$0xff]
    %v269 = vld [vmem:[#allocation7 + $0x78] sm:$0xff]
    %v270 = vld [vmem:[%s6] sm:$0x1]
    %v272 = vlaneseq
    %v273 = vshrl.u32 %v272, 7
    %v274 = vsub.s32 0, %v273
    %v275 = vrot.slane %v270, %v274
    %277 = vmatprep.subr.mxu0 0.0
    %278 = vmatpush1.msra.mxu0 %v254
    %279 = vmatprep.subr.mxu0 0.0
    %280 = vmatpush1.msra.mxu0 %v255
    %281 = vmatprep.subr.mxu0 0.0
    %282 = vmatpush1.msra.mxu0 %v256
    %283 = vmatprep.subr.mxu0 0.0
    %284 = vmatpush1.msra.mxu0 %v257
    %285 = vmatprep.subr.mxu0 0.0
    %286 = vmatpush1.msra.mxu0 %v258
    %287 = vmatprep.subr.mxu0 0.0
    %288 = vmatpush1.msra.mxu0 %v259
    %289 = vmatprep.subr.mxu0 0.0
    %290 = vmatpush1.msra.mxu0 %v260
    %291 = vmatprep.subr.mxu0 0.0
    %292 = vmatpush1.msra.mxu0 %v261
    %293 = vmatprep.subr.mxu0 0.0
    %294 = vmatpush1.msra.mxu0 %v262
    %295 = vmatprep.subr.mxu0 0.0
    %296 = vmatpush1.msra.mxu0 %v263
    %297 = vmatprep.subr.mxu0 0.0
    %298 = vmatpush1.msra.mxu0 %v264
    %299 = vmatprep.subr.mxu0 0.0
    %300 = vmatpush1.msra.mxu0 %v265
    %301 = vmatprep.subr.mxu0 0.0
    %302 = vmatpush1.msra.mxu0 %v266
    %303 = vmatprep.subr.mxu0 0.0
    %304 = vmatpush1.msra.mxu0 %v267
    %305 = vmatprep.subr.mxu0 0.0
    %306 = vmatpush1.msra.mxu0 %v268
    %307 = vmatprep.subr.mxu0 0.0
    %308 = vmatpush1.msra.mxu0 %v269
    %309 = vmatprep.subr.mxu0 0.0
    %310 = vmatpush1.msra.mxu0 0.0
    %311 = vmatprep.subr.mxu0 0.0
    %312 = vmatpush1.msra.mxu0 0.0
    %313 = vmatprep.subr.mxu0 0.0
    %314 = vmatpush1.msra.mxu0 0.0
    %315 = vmatprep.subr.mxu0 0.0
    %316 = vmatpush1.msra.mxu0 0.0
    %317 = vmatprep.subr.mxu0 0.0
    %318 = vmatpush1.msra.mxu0 0.0
    %319 = vmatprep.subr.mxu0 0.0
    %320 = vmatpush1.msra.mxu0 0.0
    %321 = vmatprep.subr.mxu0 0.0
    %322 = vmatpush1.msra.mxu0 0.0
    %323 = vmatprep.subr.mxu0 0.0
    %324 = vmatpush1.msra.mxu0 0.0
    %325 = vmatprep.subr.mxu0 0.0
    %326 = vmatpush1.msra.mxu0 0.0
    %327 = vmatprep.subr.mxu0 0.0
    %328 = vmatpush1.msra.mxu0 0.0
    %329 = vmatprep.subr.mxu0 0.0
    %330 = vmatpush1.msra.mxu0 0.0
    %331 = vmatprep.subr.mxu0 0.0
    %332 = vmatpush1.msra.mxu0 0.0
    %333 = vmatprep.subr.mxu0 0.0
    %334 = vmatpush1.msra.mxu0 0.0
    %335 = vmatprep.subr.mxu0 0.0
    %336 = vmatpush1.msra.mxu0 0.0
    %337 = vmatprep.subr.mxu0 0.0
    %338 = vmatpush1.msra.mxu0 0.0
    %339 = vmatprep.subr.mxu0 0.0
    %340 = vmatpush1.msra.mxu0 0.0
    %341 = vmatprep.mubr.f32.mxu0 0.0
    %342 = vmatmul.mubr.f32.gmra.mrb[0].mxu0 %v252
    %v343 = vpop.f32.mrb[0].mxu0
    %v344 = vadd.f32 %v275, %v343
    %v345 = vpop.f32.mrb[0].mxu0
    %346 = vdwg.mxu0
    %v347 = vtanh.pop %v344
    %v348 = vld [vmem:[#allocation8] sm:$0xff]
    %v349 = vld [vmem:[#allocation8 + $0x8] sm:$0xff]
    %v350 = vld [vmem:[#allocation8 + $0x10] sm:$0xff]
    %v351 = vld [vmem:[#allocation8 + $0x18] sm:$0xff]
    %v352 = vld [vmem:[#allocation8 + $0x20] sm:$0xff]
    %v353 = vld [vmem:[#allocation8 + $0x28] sm:$0xff]
    %v354 = vld [vmem:[#allocation8 + $0x30] sm:$0xff]
    %v355 = vld [vmem:[#allocation8 + $0x38] sm:$0xff]
    %v356 = vld [vmem:[#allocation8 + $0x40] sm:$0xff]
    %v357 = vld [vmem:[#allocation8 + $0x48] sm:$0xff]
    %v358 = vld [vmem:[#allocation8 + $0x50] sm:$0xff]
    %v359 = vld [vmem:[#allocation8 + $0x58] sm:$0xff]
    %v360 = vld [vmem:[#allocation8 + $0x60] sm:$0xff]
    %v361 = vld [vmem:[#allocation8 + $0x68] sm:$0xff]
    %v362 = vld [vmem:[#allocation8 + $0x70] sm:$0xff]
    %v363 = vld [vmem:[#allocation8 + $0x78] sm:$0xff]
    %v364 = vld [vmem:[%s8] sm:$0x1]
    %v366 = vlaneseq
    %v367 = vshrl.u32 %v366, 7
    %v368 = vsub.s32 0, %v367
    %v369 = vrot.slane %v364, %v368
    %371 = vmatprep.subr.mxu0 0.0
    %372 = vmatpush1.msra.mxu0 %v348
    %373 = vmatprep.subr.mxu0 0.0
    %374 = vmatpush1.msra.mxu0 %v349
    %375 = vmatprep.subr.mxu0 0.0
    %376 = vmatpush1.msra.mxu0 %v350
    %377 = vmatprep.subr.mxu0 0.0
    %378 = vmatpush1.msra.mxu0 %v351
    %379 = vmatprep.subr.mxu0 0.0
    %380 = vmatpush1.msra.mxu0 %v352
    %381 = vmatprep.subr.mxu0 0.0
    %382 = vmatpush1.msra.mxu0 %v353
    %383 = vmatprep.subr.mxu0 0.0
    %384 = vmatpush1.msra.mxu0 %v354
    %385 = vmatprep.subr.mxu0 0.0
    %386 = vmatpush1.msra.mxu0 %v355
    %387 = vmatprep.subr.mxu0 0.0
    %388 = vmatpush1.msra.mxu0 %v356
    %389 = vmatprep.subr.mxu0 0.0
    %390 = vmatpush1.msra.mxu0 %v357
    %391 = vmatprep.subr.mxu0 0.0
    %392 = vmatpush1.msra.mxu0 %v358
    %393 = vmatprep.subr.mxu0 0.0
    %394 = vmatpush1.msra.mxu0 %v359
    %395 = vmatprep.subr.mxu0 0.0
    %396 = vmatpush1.msra.mxu0 %v360
    %397 = vmatprep.subr.mxu0 0.0
    %398 = vmatpush1.msra.mxu0 %v361
    %399 = vmatprep.subr.mxu0 0.0
    %400 = vmatpush1.msra.mxu0 %v362
    %401 = vmatprep.subr.mxu0 0.0
    %402 = vmatpush1.msra.mxu0 %v363
    %403 = vmatprep.subr.mxu0 0.0
    %404 = vmatpush1.msra.mxu0 0.0
    %405 = vmatprep.subr.mxu0 0.0
    %406 = vmatpush1.msra.mxu0 0.0
    %407 = vmatprep.subr.mxu0 0.0
    %408 = vmatpush1.msra.mxu0 0.0
    %409 = vmatprep.subr.mxu0 0.0
    %410 = vmatpush1.msra.mxu0 0.0
    %411 = vmatprep.subr.mxu0 0.0
    %412 = vmatpush1.msra.mxu0 0.0
    %413 = vmatprep.subr.mxu0 0.0
    %414 = vmatpush1.msra.mxu0 0.0
    %415 = vmatprep.subr.mxu0 0.0
    %416 = vmatpush1.msra.mxu0 0.0
    %417 = vmatprep.subr.mxu0 0.0
    %418 = vmatpush1.msra.mxu0 0.0
    %419 = vmatprep.subr.mxu0 0.0
    %420 = vmatpush1.msra.mxu0 0.0
    %421 = vmatprep.subr.mxu0 0.0
    %422 = vmatpush1.msra.mxu0 0.0
    %423 = vmatprep.subr.mxu0 0.0
    %424 = vmatpush1.msra.mxu0 0.0
    %425 = vmatprep.subr.mxu0 0.0
    %426 = vmatpush1.msra.mxu0 0.0
    %427 = vmatprep.subr.mxu0 0.0
    %428 = vmatpush1.msra.mxu0 0.0
    %429 = vmatprep.subr.mxu0 0.0
    %430 = vmatpush1.msra.mxu0 0.0
    %431 = vmatprep.subr.mxu0 0.0
    %432 = vmatpush1.msra.mxu0 0.0
    %433 = vmatprep.subr.mxu0 0.0
    %434 = vmatpush1.msra.mxu0 0.0
    %435 = vmatprep.mubr.f32.mxu0 0.0
    %436 = vmatmul.mubr.f32.gmra.mrb[0].mxu0 %v347
    %v437 = vpop.f32.mrb[0].mxu0
    %v438 = vadd.f32 %v369, %v437
    %v439 = vpop.f32.mrb[0].mxu0
    %440 = vdwg.mxu0
    %441 = vst [vmem:[#allocation10] sm:$0x3] %v438
    // Predicated region
    $region54: #{actor_rnn_forward.1} parent=1 // pred_check
      _
    $region55: #{actor_rnn_forward.1} parent=1 // pred_check_branch
      %443 = sbr.rel (0) target = $region57
    $region56: #{actor_rnn_forward.1} parent=1 // pred_region
      %s445 = ssub.s32 32, 32
      %446 = vsyncadd [#allocation4], %s445
      %s448 = sshll.u32 [#allocation10], 4
      %s449 = int_to_ptr.vmem [resolvable:$true] %s448
      %451 = dma.vmem_to_hbm [thread:$0]  %s449, 32, %s9, [#allocation4]
    $region57: #{actor_rnn_forward.1} parent=1 // pred_fallthru
      _
    // Predicated region
    $region58: #{actor_rnn_forward.1} parent=1 // pred_check
      _
    $region59: #{actor_rnn_forward.1} parent=1 // pred_check_branch
      %453 = sbr.rel (0) target = $region61
    $region60: #{actor_rnn_forward.1} parent=1 // pred_region
      %s455 = ssub.s32 32, 32
      %456 = vsyncadd [#allocation12], %s455
      %s458 = sshll.u32 [#allocation11], 4
      %s459 = int_to_ptr.vmem [resolvable:$true] %s458
      %461 = dma.vmem_to_hbm [thread:$0]  %s459, 32, %s10, [#allocation12]
    $region61: #{actor_rnn_forward.1} parent=1 // pred_fallthru
      _
    // Predicated region
    $region62: #{actor_rnn_forward.1} parent=1 // pred_check
      _
    $region63: #{actor_rnn_forward.1} parent=1 // pred_check_branch
      %463 = sbr.rel (0) target = $region65
    $region64: #{actor_rnn_forward.1} parent=1 // pred_region
      %464 = dma.done [#allocation4], 32
    $region65: #{actor_rnn_forward.1} parent=1 // pred_fallthru
      _
    // Predicated region
    $region66: #{actor_rnn_forward.1} parent=1 // pred_check
      _
    $region67: #{actor_rnn_forward.1} parent=1 // pred_check_branch
      %466 = sbr.rel (0) target = $region69
    $region68: #{actor_rnn_forward.1} parent=1 // pred_region
      %467 = dma.done [#allocation12], 32
    $region69: #{actor_rnn_forward.1} parent=1 // pred_fallthru
      _
    %468 = vsyncpa [#allocation3], 1
    %469 = vsyncpa [#allocation6], 1
    %470 = vsyncpa [#allocation9], 1
    %471 = vsyncpa [#allocation4], 1
    %472 = vsyncpa [#allocation12], 1

</llo_original>
